<compile_context>
chip_gen: v6e
topology: v6e:2x2x1
jax: 0.10.0
libtpu: 0.0.40
codegen_flags: <defaults>
</compile_context>

<pallas_src>
import functools

import jax
import jax.numpy as jnp
from jax.experimental import pallas as pl
from jax.experimental.pallas import tpu as pltpu


def _angular_loss_kernel(x_ref, lab_ref, out_ref, acc_ref, *,
                         s, m, eps, loss_type, n_total):
    i = pl.program_id(0)

    @pl.when(i == 0)
    def _():
        acc_ref[...] = jnp.zeros_like(acc_ref)

    x = x_ref[...].astype(jnp.float32)            # (TB, C)
    lab_idx = lab_ref[...]                        # (TB, 1) int32
    tb, c = x.shape

    # Per-row one-hot built from the integer label index (no (N, C) one-hot
    # streamed from HBM).
    col = jax.lax.broadcasted_iota(jnp.int32, (tb, c), 1)
    onehot = col == lab_idx                       # (TB, C) bool

    # Target cosine x[r, label_r].
    t = jnp.sum(jnp.where(onehot, x, 0.0), axis=-1, keepdims=True)  # (TB, 1)

    if loss_type == 'cosface':
        numerator = s * (t - m)
    elif loss_type == 'arcface':
        tc = jnp.clip(t, -1.0 + eps, 1.0 - eps)
        # cos(acos(tc) + m) == tc*cos(m) - sqrt(1 - tc^2)*sin(m)  (exact identity)
        numerator = s * (tc * jnp.cos(m) - jnp.sqrt(1.0 - tc * tc) * jnp.sin(m))
    else:  # sphereface
        # TODO(synk): jnp.arccos may not lower on all Mosaic versions; the
        # arcface/cosface paths avoid it via trig identities.
        tc = jnp.clip(t, -1.0 + eps, 1.0 - eps)
        numerator = s * jnp.cos(m * jnp.arccos(tc))

    # sum_{j != y} exp(s*x_j) == sum_j exp(s*x_j) - exp(s*t)   (no masked select)
    exp_sx = jnp.exp(s * x)
    full_sum = jnp.sum(exp_sx, axis=-1, keepdims=True)
    denom = jnp.exp(numerator) + full_sum - jnp.exp(s * t)

    L = numerator - jnp.log(denom)                # (TB, 1)

    # Mask rows that fall outside the real batch (partial final block).
    row = jax.lax.broadcasted_iota(jnp.int32, (tb, 1), 0)
    valid = (i * tb + row) < n_total
    acc_ref[...] += jnp.where(valid, L, 0.0)

    @pl.when(i == pl.num_programs(0) - 1)
    def _():
        out_ref[...] = -(jnp.sum(acc_ref[...], axis=0, keepdims=True)
                         / jnp.float32(n_total))


def _choose_block_rows(n, c, per_buffer_bytes=4 * 1024 * 1024):
    """Largest row tile whose f32 x-tile fits a conservative per-buffer VMEM
    budget (2x double-buffered stays well under the scoped-VMEM default on
    v5e/v6e/v7x)."""
    max_rows = max(8, per_buffer_bytes // (4 * c))
    if n <= max_rows:
        return n                       # whole batch in one grid step
    return max(8, (max_rows // 8) * 8)  # multiple of 8 (sublane tiling)


def angular_penalty_sm_loss(x, labels, loss_type='arcface', eps=1e-7,
                            s=None, m=None, block_rows=None):
    """Pallas TPU implementation of AngularPenaltySMLoss.forward.

    x:      (N, in_features) cosine similarities.
    labels: (N, in_features) score / one-hot matrix (argmax picks the class),
            matching the PyTorch module's `torch.argmax(labels, dim=-1)`.
    """
    loss_type = loss_type.lower()
    assert loss_type in ('arcface', 'sphereface', 'cosface')
    if loss_type == 'arcface':
        s_ = 16.0 if s is None else s
        m_ = 0.05 if m is None else m
    elif loss_type == 'sphereface':
        s_ = 64.0 if s is None else s
        m_ = 1.35 if m is None else m
    else:  # cosface
        s_ = 30.0 if s is None else s
        m_ = 0.4 if m is None else m

    n, c = x.shape
    if block_rows is None:
        tb = _choose_block_rows(n, c)
    else:
        tb = min(block_rows, n)
        if tb < n:
            tb = max(8, (tb // 8) * 8)   # keep sublane-tile constraint
    grid = pl.cdiv(n, tb)

    # argmax once in the wrapper -> stream 4 B/row instead of 4*C B/row.
    lab_idx = jnp.argmax(labels, axis=-1).astype(jnp.int32).reshape(n, 1)

    kernel = functools.partial(_angular_loss_kernel, s=s_, m=m_, eps=eps,
                               loss_type=loss_type, n_total=n)

    out = pl.pallas_call(
        kernel,
        out_shape=jax.ShapeDtypeStruct((1, 1), jnp.float32),
        grid_spec=pltpu.PrefetchScalarGridSpec(
            num_scalar_prefetch=0,
            grid=(grid,),
            in_specs=[pl.BlockSpec((tb, c), lambda i: (i, 0)),
                      pl.BlockSpec((tb, 1), lambda i: (i, 0))],
            out_specs=pl.BlockSpec((1, 1), lambda i: (0, 0)),
            scratch_shapes=[pltpu.VMEM((tb, 1), jnp.float32)],
        ),
        compiler_params=pltpu.CompilerParams(
            dimension_semantics=("arbitrary",)),
    )(x, lab_idx)
    return out[0, 0]


def _reference_loss(x, labels, loss_type='arcface', eps=1e-7, s=None, m=None):
    """Pure-JAX mirror of the PyTorch forward for validation."""
    if loss_type == 'arcface':
        s_, m_ = (16.0 if s is None else s), (0.05 if m is None else m)
    elif loss_type == 'sphereface':
        s_, m_ = (64.0 if s is None else s), (1.35 if m is None else m)
    else:
        s_, m_ = (30.0 if s is None else s), (0.4 if m is None else m)

    lab = jnp.argmax(labels, axis=-1)
    t = jnp.take_along_axis(x, lab[:, None], axis=1)[:, 0]
    if loss_type == 'cosface':
        numerator = s_ * (t - m_)
    elif loss_type == 'arcface':
        numerator = s_ * jnp.cos(jnp.arccos(jnp.clip(t, -1.0 + eps, 1.0 - eps)) + m_)
    else:
        numerator = s_ * jnp.cos(m_ * jnp.arccos(jnp.clip(t, -1.0 + eps, 1.0 - eps)))
    onehot = jax.nn.one_hot(lab, x.shape[1], dtype=bool)
    excl_sum = jnp.sum(jnp.where(onehot, 0.0, jnp.exp(s_ * x)), axis=1)
    denominator = jnp.exp(numerator) + excl_sum
    L = numerator - jnp.log(denominator)
    return -jnp.mean(L)


if __name__ == "__main__":
    key = jax.random.PRNGKey(0)
    N, C = 16, 32  # (batch, in_features)
    kx, kl = jax.random.split(key)

    # x are cosine similarities in [-1, 1]; labels are one-hot class scores.
    x = jax.random.uniform(kx, (N, C), jnp.float32, minval=-1.0, maxval=1.0)
    label_idx = jax.random.randint(kl, (N,), 0, C)
    labels = jax.nn.one_hot(label_idx, C, dtype=jnp.float32)

    for lt in ('arcface', 'cosface'):
        loss = angular_penalty_sm_loss(x, labels, loss_type=lt)
        jax.block_until_ready(loss)
        ref = _reference_loss(x, labels, loss_type=lt)
        assert jnp.allclose(loss, ref, atol=1e-4, rtol=1e-4), (lt, loss, ref)

    print("KERNEL_OK")
</pallas_src>

<mosaic_0001>
module attributes {stable_mosaic.version = 11 : i64} {
  func.func @_angular_loss_kernel(%arg0: i32, %arg1: memref<16x32xf32, #tpu.memory_space<vmem>>, %arg2: memref<16x1xi32, #tpu.memory_space<vmem>>, %arg3: memref<1x1xf32, #tpu.memory_space<vmem>>, %arg4: memref<16x1xf32, #tpu.memory_space<vmem>>) attributes {dimension_semantics = [#tpu.dimension_semantics<arbitrary>], iteration_bounds = array<i64: 1>, scalar_prefetch = 0 : i64, scratch_operands = 1 : i64, tpu.core_type = #tpu.core_type<tc>, window_params = [{transform_indices = @transform_0, window_bounds = array<i64: 16, 32>}, {transform_indices = @transform_1, window_bounds = array<i64: 16, 1>}, {pipeline_mode = #tpu.pipeline_mode<synchronous>, transform_indices = @transform_2, window_bounds = array<i64: 1, 1>}]} {
    %c0_i32 = arith.constant 0 : i32
    %0 = arith.cmpi eq, %arg0, %c0_i32 : i32
    %1 = arith.extui %0 : i1 to i32
    %c0_i32_0 = arith.constant 0 : i32
    %2 = arith.cmpi ne, %1, %c0_i32_0 : i32
    scf.if %2 {
      %cst_22 = arith.constant 0.000000e+00 : f32
      %56 = vector.broadcast %cst_22 : f32 to vector<16x1xf32>
      %c0_23 = arith.constant 0 : index
      %c0_24 = arith.constant 0 : index
      %57 = vector.load %arg4[%c0_23, %c0_24] : memref<16x1xf32, #tpu.memory_space<vmem>>, vector<16x1xf32>
      tpu.vector_store %arg4[%c0_23, %c0_24], %56 {strides = array<i32>} : memref<16x1xf32, #tpu.memory_space<vmem>>, vector<16x1xf32>,
    } else {
    }
    %c0 = arith.constant 0 : index
    %c0_1 = arith.constant 0 : index
    %3 = vector.load %arg1[%c0, %c0_1] : memref<16x32xf32, #tpu.memory_space<vmem>>, vector<16x32xf32>
    %c0_2 = arith.constant 0 : index
    %c0_3 = arith.constant 0 : index
    %4 = vector.load %arg2[%c0_2, %c0_3] : memref<16x1xi32, #tpu.memory_space<vmem>>, vector<16x1xi32>
    %5 = tpu.iota {dimensions = array<i32: 1>} : vector<16x32xi32>
    %6 = vector.broadcast %4 : vector<16x1xi32> to vector<16x32xi32>
    %7 = arith.cmpi eq, %5, %6 : vector<16x32xi32>
    %cst = arith.constant 0.000000e+00 : f32
    %8 = vector.broadcast %cst : f32 to vector<16x32xf32>
    %9 = arith.select %7, %3, %8 : vector<16x32xi1>, vector<16x32xf32>
    %cst_4 = arith.constant dense<0.000000e+00> : vector<16xf32>
    %10 = vector.multi_reduction <add>, %9, %cst_4 [1] : vector<16x32xf32> to vector<16xf32>
    %11 = vector.shape_cast %10 : vector<16xf32> to vector<16x1xf32>
    %cst_5 = arith.constant -0.99999988 : f32
    %cst_6 = arith.constant 0.99999988 : f32
    %12 = vector.broadcast %cst_5 : f32 to vector<16x1xf32>
    %13 = arith.maximumf %12, %11 : vector<16x1xf32>
    %14 = vector.broadcast %cst_6 : f32 to vector<16x1xf32>
    %15 = arith.minimumf %14, %13 : vector<16x1xf32>
    %cst_7 = arith.constant 5.000000e-02 : f32
    %16 = math.cos %cst_7 : f32
    %17 = vector.broadcast %16 : f32 to vector<16x1xf32>
    %18 = arith.mulf %15, %17 : vector<16x1xf32>
    %19 = arith.mulf %15, %15 : vector<16x1xf32>
    %cst_8 = arith.constant 1.000000e+00 : f32
    %20 = vector.broadcast %cst_8 : f32 to vector<16x1xf32>
    %21 = arith.subf %20, %19 : vector<16x1xf32>
    %22 = math.sqrt %21 : vector<16x1xf32>
    %cst_9 = arith.constant 5.000000e-02 : f32
    %23 = math.sin %cst_9 : f32
    %24 = vector.broadcast %23 : f32 to vector<16x1xf32>
    %25 = arith.mulf %22, %24 : vector<16x1xf32>
    %26 = arith.subf %18, %25 : vector<16x1xf32>
    %cst_10 = arith.constant 1.600000e+01 : f32
    %27 = vector.broadcast %cst_10 : f32 to vector<16x1xf32>
    %28 = arith.mulf %27, %26 : vector<16x1xf32>
    %cst_11 = arith.constant 1.600000e+01 : f32
    %29 = vector.broadcast %cst_11 : f32 to vector<16x32xf32>
    %30 = arith.mulf %29, %3 : vector<16x32xf32>
    %31 = math.exp %30 : vector<16x32xf32>
    %cst_12 = arith.constant dense<0.000000e+00> : vector<16xf32>
    %32 = vector.multi_reduction <add>, %31, %cst_12 [1] : vector<16x32xf32> to vector<16xf32>
    %33 = vector.shape_cast %32 : vector<16xf32> to vector<16x1xf32>
    %34 = math.exp %28 : vector<16x1xf32>
    %35 = arith.addf %34, %33 : vector<16x1xf32>
    %cst_13 = arith.constant 1.600000e+01 : f32
    %36 = vector.broadcast %cst_13 : f32 to vector<16x1xf32>
    %37 = arith.mulf %36, %11 : vector<16x1xf32>
    %38 = math.exp %37 : vector<16x1xf32>
    %39 = arith.subf %35, %38 : vector<16x1xf32>
    %40 = math.log %39 : vector<16x1xf32>
    %41 = arith.subf %28, %40 : vector<16x1xf32>
    %42 = tpu.iota {dimensions = array<i32: 0>} : vector<16x1xi32>
    %c16_i32 = arith.constant 16 : i32
    %43 = arith.muli %arg0, %c16_i32 : i32
    %44 = vector.broadcast %43 : i32 to vector<16x1xi32>
    %45 = arith.addi %44, %42 : vector<16x1xi32>
    %c16_i32_14 = arith.constant 16 : i32
    %46 = vector.broadcast %c16_i32_14 : i32 to vector<16x1xi32>
    %47 = arith.cmpi slt, %45, %46 : vector<16x1xi32>
    %c0_15 = arith.constant 0 : index
    %c0_16 = arith.constant 0 : index
    %48 = vector.load %arg4[%c0_15, %c0_16] : memref<16x1xf32, #tpu.memory_space<vmem>>, vector<16x1xf32>
    %cst_17 = arith.constant 0.000000e+00 : f32
    %49 = vector.broadcast %cst_17 : f32 to vector<16x1xf32>
    %50 = arith.select %47, %41, %49 : vector<16x1xi1>, vector<16x1xf32>
    %51 = arith.addf %48, %50 : vector<16x1xf32>
    %c0_18 = arith.constant 0 : index
    %c0_19 = arith.constant 0 : index
    %52 = vector.load %arg4[%c0_18, %c0_19] : memref<16x1xf32, #tpu.memory_space<vmem>>, vector<16x1xf32>
    tpu.vector_store %arg4[%c0_18, %c0_19], %51 {strides = array<i32>} : memref<16x1xf32, #tpu.memory_space<vmem>>, vector<16x1xf32>,
    %c0_i32_20 = arith.constant 0 : i32
    %53 = arith.cmpi eq, %arg0, %c0_i32_20 : i32
    %54 = arith.extui %53 : i1 to i32
    %c0_i32_21 = arith.constant 0 : i32
    %55 = arith.cmpi ne, %54, %c0_i32_21 : i32
    scf.if %55 {
      %c0_22 = arith.constant 0 : index
      %c0_23 = arith.constant 0 : index
      %56 = vector.load %arg4[%c0_22, %c0_23] : memref<16x1xf32, #tpu.memory_space<vmem>>, vector<16x1xf32>
      %cst_24 = arith.constant dense<0.000000e+00> : vector<1xf32>
      %57 = vector.multi_reduction <add>, %56, %cst_24 [0] : vector<16x1xf32> to vector<1xf32>
      %58 = vector.shape_cast %57 : vector<1xf32> to vector<1x1xf32>
      %cst_25 = arith.constant 1.600000e+01 : f32
      %59 = vector.broadcast %cst_25 : f32 to vector<1x1xf32>
      %60 = arith.divf %58, %59 : vector<1x1xf32>
      %cst_26 = arith.constant 0.000000e+00 : f32
      %61 = vector.broadcast %cst_26 : f32 to vector<1x1xf32>
      %62 = arith.subf %61, %60 : vector<1x1xf32>
      %c0_27 = arith.constant 0 : index
      %c0_28 = arith.constant 0 : index
      %63 = vector.load %arg3[%c0_27, %c0_28] : memref<1x1xf32, #tpu.memory_space<vmem>>, vector<1x1xf32>
      tpu.vector_store %arg3[%c0_27, %c0_28], %62 {strides = array<i32>} : memref<1x1xf32, #tpu.memory_space<vmem>>, vector<1x1xf32>,
    } else {
    }
    return
  }
  func.func @transform_0(%arg0: i32) -> (i32, i32) {
    %c0_i32 = arith.constant 0 : i32
    %c0_i32_0 = arith.constant 0 : i32
    return %arg0, %c0_i32 : i32, i32
  }
  func.func @transform_1(%arg0: i32) -> (i32, i32) {
    %c0_i32 = arith.constant 0 : i32
    %c0_i32_0 = arith.constant 0 : i32
    return %arg0, %c0_i32 : i32, i32
  }
  func.func @transform_2(%arg0: i32) -> (i32, i32) {
    %c0_i32 = arith.constant 0 : i32
    %c0_i32_0 = arith.constant 0 : i32
    %c0_i32_1 = arith.constant 0 : i32
    return %c0_i32, %c0_i32_0 : i32, i32
  }
}

</mosaic_0001>

<llo_original>
// kernel: tpu_custom_call.1
$region0: #{tpu_custom_call.1}
  #allocation0 [shape = 'u32[]', space=smem, size = 0x4, offset = 0x4, fixed_abs, tag = 'smem constant byte address 0x4 - core index']
  #allocation1 [shape = 'u32[144,128]{1,0:T(1,128)}', space=vmem, size = 0x12000, scoped, tag = 'internal scratch']
  #allocation2 [shape = 'f32[16,1]{1,0:T(8,128)}', space=vmem, size = 0x2000, scoped, tag = 'scratch operand']
  %s0 = inlined_call_operand.vmem [shape: f32[16,32], index: 0, kind: input, shape index: {}]
  %s1 = inlined_call_operand.vmem [shape: s32[16,1], index: 1, kind: input, shape index: {}]
  %s2 = inlined_call_operand.hbm [shape: f32[1,1], index: 2, kind: output, shape index: {}]
  %s3 = sld [smem:[#allocation0]]
  $region26: #{tpu_custom_call.1} parent=0
    _
  %s5 = ssub.s32 1, %s3
  %s6 = scalar_select 0, %s5, %s3
  $region1: #{tpu_custom_call.1} parent=0
    #allocation3 [shape = 'u8[512]{0}', space=vmem, size = 0x400, scoped, tag = 'output window, operand 0, single buffered']
    #allocation4 [shape = 's32[1]{0}', space=sflag, size = 0x4, scoped, tag = 'scoped memory for tpu_custom_call.1']
    %7 = vsyncpa [#allocation4], 0
    // Predicated region
    $region2: #{tpu_custom_call.1} parent=1 // pred_check
      _
    $region3: #{tpu_custom_call.1} parent=1 // pred_check_branch
      %9 = sbr.rel (0) target = $region5
    $region4: #{tpu_custom_call.1} parent=1 // pred_region
      _
    $region5: #{tpu_custom_call.1} parent=1 // pred_fallthru
      _
    // Predicated region
    $region6: #{tpu_custom_call.1} parent=1 // pred_check
      _
    $region7: #{tpu_custom_call.1} parent=1 // pred_check_branch
      %11 = sbr.rel (0) target = $region9
    $region8: #{tpu_custom_call.1} parent=1 // pred_region
      _
    $region9: #{tpu_custom_call.1} parent=1 // pred_fallthru
      _
    %p12 = scmp.eq.s32.totalorder 0, 0
    // Predicated region
    $region10: #{tpu_custom_call.1} parent=1 // pred_check
      %p13 = pneg %p12
    $region11: #{tpu_custom_call.1} parent=1 // pred_check_branch
      %15 = sbr.rel (%p13) target = $region13
    $region12: #{tpu_custom_call.1} parent=1 // pred_region
      %vm16 = vcmask 7168
      %17 = vst.msk [vmem:[#allocation2] sm:$0xff] %vm16, 0.0
      %18 = vst.msk [vmem:[#allocation2 + $0x8] sm:$0xff] %vm16, 0.0
    $region13: #{tpu_custom_call.1} parent=1 // pred_fallthru
      _
    %v19 = vld [vmem:[%s0] sm:$0xff]
    %v20 = vld [vmem:[%s0 + $0x8] sm:$0xff]
    %v21 = vld [vmem:[%s1] sm:$0xff]
    %v22 = vld [vmem:[%s1 + $0x8] sm:$0xff]
    %v23 = vlaneseq
    %v24 = vand.u32 %v23, 127
    %25 = vset.pattern.permute.xlu0 0
    %26 = vperm.xlu0 %25, %v21
    %v27 = vpop.permute.xlu0 %26
    %28 = vset.pattern.permute.xlu0 0
    %29 = vperm.xlu0 %28, %v22
    %v30 = vpop.permute.xlu0 %29
    %vm31 = vcmp.eq.s32.totalorder %v24, %v27
    %vm32 = vcmp.eq.s32.totalorder %v24, %v30
    %v33 = vsel %vm31, %v19, 0.0
    %v34 = vsel %vm32, %v20, 0.0
    %vm35 = vcmask 261120
    %v36 = vsel %vm35, %v33, 0.0
    %37 = vadd.xlane.f32.xlu0 %v36
    %v38 = vpop.xlane.xlu0 %37
    %v39 = vsel %vm35, %v34, 0.0
    %40 = vadd.xlane.f32.xlu0 %v39
    %v41 = vpop.xlane.xlu0 %40
    %v42 = vmax.f32 %v38, -0.9999999
    %v43 = vmax.f32 %v41, -0.9999999
    %v44 = vmin.f32 %v42, 0.9999999
    %v45 = vmin.f32 %v43, 0.9999999
    %v46 = vmul.f32 %v44, 0.99875027
    %v47 = vmul.f32 %v45, 0.99875027
    %v48 = vmul.f32 %v44, %v44
    %v49 = vmul.f32 %v45, %v45
    %v50 = vsub.f32 1.0, %v48
    %v51 = vsub.f32 1.0, %v49
    %v52 = vrsqrt.pop %v50
    %v53 = vmul.f32 %v50, %v52
    %vm54 = vcmp.eq.f32.partialorder %v50, inf
    %v55 = vsel %vm54, %v50, %v53
    %vm56 = vcmp.eq.f32.partialorder %v50, 0.0
    %v57 = vand.u32 %v50, 2147483648
    %v58 = vsel %vm56, %v57, %v55
    %v59 = vrsqrt.pop %v51
    %v60 = vmul.f32 %v51, %v59
    %vm61 = vcmp.eq.f32.partialorder %v51, inf
    %v62 = vsel %vm61, %v51, %v60
    %vm63 = vcmp.eq.f32.partialorder %v51, 0.0
    %v64 = vand.u32 %v51, 2147483648
    %v65 = vsel %vm63, %v64, %v62
    %v66 = vmul.f32 %v58, 0.04997917
    %v67 = vmul.f32 %v65, 0.04997917
    %v68 = vsub.f32 %v46, %v66
    %v69 = vsub.f32 %v47, %v67
    %v70 = vmul.f32 %v68, 16.0
    %v71 = vmul.f32 %v69, 16.0
    %v72 = vmul.f32 %v19, 16.0
    %v73 = vmul.f32 %v20, 16.0
    %v74 = vmul.f32 %v72, 1.442695
    %v75 = vpow.pop %v74
    %v76 = vmul.f32 %v73, 1.442695
    %v77 = vpow.pop %v76
    %v78 = vsel %vm35, %v75, 0.0
    %79 = vadd.xlane.f32.xlu0 %v78
    %v80 = vpop.xlane.xlu0 %79
    %v81 = vsel %vm35, %v77, 0.0
    %82 = vadd.xlane.f32.xlu0 %v81
    %v83 = vpop.xlane.xlu0 %82
    %v84 = vmul.f32 %v70, 1.442695
    %v85 = vpow.pop %v84
    %v86 = vmul.f32 %v71, 1.442695
    %v87 = vpow.pop %v86
    %v88 = vadd.f32 %v85, %v80
    %v89 = vadd.f32 %v87, %v83
    %v90 = vmul.f32 %v38, 16.0
    %v91 = vmul.f32 %v41, 16.0
    %v92 = vmul.f32 %v90, 1.442695
    %v93 = vpow.pop %v92
    %v94 = vmul.f32 %v91, 1.442695
    %v95 = vpow.pop %v94
    %v96 = vsub.f32 %v88, %v93
    %v97 = vsub.f32 %v89, %v95
    %v98 = vlog2.pop %v96
    %v99 = vmul.f32 %v98, 0.6931472
    %v100 = vlog2.pop %v97
    %v101 = vmul.f32 %v100, 0.6931472
    %v102 = vsub.f32 %v70, %v99
    %v103 = vsub.f32 %v71, %v101
    %v104 = vlaneseq
    %v105 = vshrl.u32 %v104, 7
    %v106 = vadd.s32 %v105, 8
    %s107 = smul.u32 0, 16
    %v108 = vstv %s107
    %v109 = vadd.s32 %v108, %v105
    %v110 = vadd.s32 %v108, %v106
    %vm111 = vcmp.lt.s32.totalorder %v109, 16
    %vm112 = vcmp.lt.s32.totalorder %v110, 16
    %v113 = vld [vmem:[#allocation2] sm:$0xff]
    %v114 = vld [vmem:[#allocation2 + $0x8] sm:$0xff]
    %v115 = vsel %vm111, %v102, 0.0
    %v116 = vsel %vm112, %v103, 0.0
    %v117 = vadd.f32 %v113, %v115
    %v118 = vadd.f32 %v114, %v116
    %vm119 = vcmask 7168
    %120 = vst.msk [vmem:[#allocation2] sm:$0xff] %vm119, %v117
    %121 = vst.msk [vmem:[#allocation2 + $0x8] sm:$0xff] %vm119, %v118
    // Predicated region
    $region14: #{tpu_custom_call.1} parent=1 // pred_check
      %p122 = pneg %p12
    $region15: #{tpu_custom_call.1} parent=1 // pred_check_branch
      %124 = sbr.rel (%p122) target = $region17
    $region16: #{tpu_custom_call.1} parent=1 // pred_region
      %v125 = vld [vmem:[#allocation2] sm:$0xff]
      %v126 = vld [vmem:[#allocation2 + $0x8] sm:$0xff]
      %v127 = vsel %vm119, %v125, 0.0
      %v128 = vsel %vm119, %v126, 0.0
      %v129 = vadd.f32 %v127, %v128
      %v130 = vrot.slane %v129, 4
      %v131 = vadd.f32 %v129, %v130
      %v132 = vrot.slane %v131, 2
      %v133 = vadd.f32 %v131, %v132
      %v134 = vrot.slane %v133, 1
      %v135 = vadd.f32 %v133, %v134
      %v136 = vrcp.pop 16.0
      %v137 = vmul.f32 %v135, %v136
      %v138 = vsub.f32 0.0, %v137
      %vm139 = vcmask 0
      %140 = vst.msk [vmem:[#allocation3] sm:$0x1] %vm139, %v138
    $region17: #{tpu_custom_call.1} parent=1 // pred_fallthru
      _
    // Predicated region
    $region18: #{tpu_custom_call.1} parent=1 // pred_check
      _
    $region19: #{tpu_custom_call.1} parent=1 // pred_check_branch
      %142 = sbr.rel (0) target = $region21
    $region20: #{tpu_custom_call.1} parent=1 // pred_region
      %s144 = ssub.s32 16, 16
      %145 = vsyncadd [#allocation4], %s144
      %s147 = sshll.u32 [#allocation3], 4
      %s148 = int_to_ptr.vmem [resolvable:$true] %s147
      %150 = dma.vmem_to_hbm [thread:$0]  %s148, 16, %s2, [#allocation4]
    $region21: #{tpu_custom_call.1} parent=1 // pred_fallthru
      _
    // Predicated region
    $region22: #{tpu_custom_call.1} parent=1 // pred_check
      _
    $region23: #{tpu_custom_call.1} parent=1 // pred_check_branch
      %152 = sbr.rel (0) target = $region25
    $region24: #{tpu_custom_call.1} parent=1 // pred_region
      %153 = dma.done [#allocation4], 16
    $region25: #{tpu_custom_call.1} parent=1 // pred_fallthru
      _
    %154 = vsyncpa [#allocation4], 1

</llo_original>
